<compile_context>
chip_gen: v5e
topology: v5e:2x2
jax: 0.10.0
libtpu: 0.0.40
codegen_flags: <defaults>
</compile_context>

<pallas_src>
import functools

import jax
import jax.numpy as jnp
from jax.experimental import pallas as pl
from jax.experimental.pallas import tpu as pltpu


def _accuracy_kernel(out_ref, tgt_ref, cnt_ref, *, total_n: int, tile_n: int):
    """One N-tile: per-row argmax over classes, compare to labels, emit partial count."""
    i = pl.program_id(0)

    x = out_ref[...]                      # (tile_n, C) logits, native dtype
    t = tgt_ref[...]                      # (tile_n, 1) int32 labels
    tn, c = x.shape

    # argmax over the class (lane) axis; first occurrence on ties (torch semantics).
    col = jax.lax.broadcasted_iota(jnp.int32, (tn, c), 1)
    row_max = jnp.max(x, axis=1, keepdims=True)              # (tile_n, 1)
    cand = jnp.where(x == row_max, col, jnp.int32(c))        # (tile_n, C)
    pred = jnp.min(cand, axis=1, keepdims=True)              # (tile_n, 1) i32
    hit = pred == t                                          # (tile_n, 1) bool

    def write(count_i32):
        # Broadcast the partial count into this tile's disjoint output block.
        cnt_ref[...] = jnp.full(cnt_ref.shape, count_i32, dtype=jnp.int32)

    rem = total_n % tile_n  # compile-time Python int

    if rem == 0:
        # Every tile is full: no masking needed anywhere.
        write(jnp.sum(hit.astype(jnp.int32)))
    else:
        last = pl.num_programs(0) - 1

        @pl.when(i != last)
        def _full_tile():
            write(jnp.sum(hit.astype(jnp.int32)))

        @pl.when(i == last)
        def _partial_tile():
            # Only the last tile carries garbage rows; mask them out.
            valid = jax.lax.broadcasted_iota(jnp.int32, (tn, 1), 0) < rem
            write(jnp.sum((valid & hit).astype(jnp.int32)))


def _vmem_capacity_bytes() -> int:
    try:
        return int(pltpu.get_tpu_info().vmem_capacity_bytes)
    except Exception:
        return 64 * 1024 * 1024  # conservative fallback (v7x-sized)


def _pick_tile_n(n: int, c: int, itemsize: int, vmem_cap: int) -> int:
    """Largest sublane-tile of rows whose double-buffered footprint fits VMEM."""
    # Per-buffer budget: ~16 MiB on v5e/v6e (128 MiB VMEM), <= cap/4 on v7x
    # (64 MiB VMEM) so the double-buffered footprint stays ~<= 32 MiB.
    budget = min(16 * 1024 * 1024, vmem_cap // 4)
    c_pad = ((c + 127) // 128) * 128            # VMEM lane-pads the class axis
    label_row_bytes = 128 * 4                   # (tile_n,1) i32 block lane-pads to 128
    row_bytes = c_pad * itemsize + label_row_bytes
    tile = budget // max(1, row_bytes)

    align = 32                                  # covers f32(8)/bf16(16)/int8(32) packing
    tile = min(tile, ((n + align - 1) // align) * align)  # don't over-allocate small N
    tile = (tile // align) * align
    return max(align, tile)


def accuracy(output: jax.Array, target: jax.Array, *, tile_n: int | None = None) -> jax.Array:
    """output: (N, C) logits (any float dtype, read natively); target: (N,) int labels.
    Returns scalar float32 accuracy (== torch: (argmax(output,1) == target).float().mean())."""
    n, c = output.shape
    tgt2d = target.reshape(n, 1).astype(jnp.int32)

    itemsize = jnp.dtype(output.dtype).itemsize
    vmem_cap = _vmem_capacity_bytes()
    if tile_n is None:
        tile_n = _pick_tile_n(n, c, itemsize, vmem_cap)
    num_tiles = pl.cdiv(n, tile_n)

    cost = pl.CostEstimate(
        flops=3 * n * c,                                   # max, compare, min over classes
        transcendentals=0,
        bytes_accessed=n * c * itemsize + n * 4 + num_tiles * 8 * 128 * 4,
    )

    partials = pl.pallas_call(
        functools.partial(_accuracy_kernel, total_n=n, tile_n=tile_n),
        out_shape=jax.ShapeDtypeStruct((num_tiles, 8, 128), jnp.int32),
        grid=(num_tiles,),
        in_specs=[
            pl.BlockSpec((tile_n, c), lambda i: (i, 0)),   # logits, native dtype
            pl.BlockSpec((tile_n, 1), lambda i: (i, 0)),   # labels
        ],
        out_specs=pl.BlockSpec((1, 8, 128), lambda i: (i, 0, 0)),  # disjoint partial counts
        compiler_params=pltpu.CompilerParams(
            dimension_semantics=("parallel",),             # no cross-tile dependency -> megacore OK
            vmem_limit_bytes=min(64 * 1024 * 1024, (vmem_cap * 3) // 4),
        ),
        cost_estimate=cost,
    )(output, tgt2d)

    total = jnp.sum(partials[:, 0, 0])                     # exact int32 sum of partial counts
    return total.astype(jnp.float32) / jnp.float32(n)      # normalize once by true N


if __name__ == "__main__":
    key = jax.random.PRNGKey(0)
    k1, k2, k3, k4, k5, k6 = jax.random.split(key, 6)

    # Case 1: small f32 logits.
    N1, C1 = 8, 32
    out1 = jax.random.normal(k1, (N1, C1), dtype=jnp.float32)
    tgt1 = jax.random.randint(k2, (N1,), 0, C1, dtype=jnp.int32)
    m1 = accuracy(out1, tgt1)
    jax.block_until_ready(m1)
    ref1 = jnp.mean((jnp.argmax(out1, axis=1) == tgt1).astype(jnp.float32))
    assert jnp.allclose(m1, ref1), (m1, ref1)

    # Case 2: native bf16 logits, N not a multiple of the tile (exercises masking).
    N2, C2 = 20, 40
    out2 = jax.random.normal(k3, (N2, C2), dtype=jnp.bfloat16)
    tgt2 = jax.random.randint(k4, (N2,), 0, C2, dtype=jnp.int32)
    m2 = accuracy(out2, tgt2)
    jax.block_until_ready(m2)
    ref2 = jnp.mean((jnp.argmax(out2, axis=1) == tgt2).astype(jnp.float32))
    assert jnp.allclose(m2, ref2), (m2, ref2)

    # Case 3: multi-tile grid with a partial last tile (forced small tile),
    # exercises the parallel per-tile partial-count path.
    N3, C3 = 300, 16
    out3 = jax.random.normal(k5, (N3, C3), dtype=jnp.float32)
    tgt3 = jax.random.randint(k6, (N3,), 0, C3, dtype=jnp.int32)
    m3 = accuracy(out3, tgt3, tile_n=128)
    jax.block_until_ready(m3)
    ref3 = jnp.mean((jnp.argmax(out3, axis=1) == tgt3).astype(jnp.float32))
    assert jnp.allclose(m3, ref3), (m3, ref3)

    print("KERNEL_OK")
</pallas_src>

<mosaic_0001>
module attributes {stable_mosaic.version = 11 : i64} {
  func.func @_accuracy_kernel(%arg0: i32, %arg1: memref<32x32xf32, #tpu.memory_space<vmem>>, %arg2: memref<32x1xi32, #tpu.memory_space<vmem>>, %arg3: memref<1x8x128xi32, #tpu.memory_space<vmem>>) attributes {dimension_semantics = [#tpu.dimension_semantics<parallel>], iteration_bounds = array<i64: 1>, scalar_prefetch = 0 : i64, scratch_operands = 0 : i64, tpu.core_type = #tpu.core_type<tc>, window_params = [{transform_indices = @transform_0, window_bounds = array<i64: 32, 32>}, {transform_indices = @transform_1, window_bounds = array<i64: 32, 1>}, {transform_indices = @transform_2, window_bounds = array<i64: 1, 8, 128>}]} {
    %c0 = arith.constant 0 : index
    %c0_0 = arith.constant 0 : index
    %0 = vector.load %arg1[%c0, %c0_0] : memref<32x32xf32, #tpu.memory_space<vmem>>, vector<32x32xf32>
    %c0_1 = arith.constant 0 : index
    %c0_2 = arith.constant 0 : index
    %1 = vector.load %arg2[%c0_1, %c0_2] : memref<32x1xi32, #tpu.memory_space<vmem>>, vector<32x1xi32>
    %2 = tpu.iota {dimensions = array<i32: 1>} : vector<32x32xi32>
    %cst = arith.constant dense<0xFF800000> : vector<32xf32>
    %3 = vector.multi_reduction <maximumf>, %0, %cst [1] : vector<32x32xf32> to vector<32xf32>
    %4 = vector.shape_cast %3 : vector<32xf32> to vector<32x1xf32>
    %5 = vector.broadcast %4 : vector<32x1xf32> to vector<32x32xf32>
    %6 = arith.cmpf oeq, %0, %5 : vector<32x32xf32>
    %c32_i32 = arith.constant 32 : i32
    %7 = vector.broadcast %c32_i32 : i32 to vector<32x32xi32>
    %8 = arith.select %6, %2, %7 : vector<32x32xi1>, vector<32x32xi32>
    %cst_3 = arith.constant dense<2147483647> : vector<32xi32>
    %9 = vector.multi_reduction <minsi>, %8, %cst_3 [1] : vector<32x32xi32> to vector<32xi32>
    %10 = vector.shape_cast %9 : vector<32xi32> to vector<32x1xi32>
    %11 = arith.cmpi eq, %10, %1 : vector<32x1xi32>
    %c0_i32 = arith.constant 0 : i32
    %12 = arith.cmpi ne, %arg0, %c0_i32 : i32
    %13 = arith.extui %12 : i1 to i32
    %c0_i32_4 = arith.constant 0 : i32
    %14 = arith.cmpi ne, %13, %c0_i32_4 : i32
    scf.if %14 {
      %18 = arith.extui %11 : vector<32x1xi1> to vector<32x1xi32>
      %19 = vector.shape_cast %18 : vector<32x1xi32> to vector<1x32x1xi32>
      %cst_7 = arith.constant dense<0> : vector<1xi32>
      %20 = vector.multi_reduction <add>, %19, %cst_7 [1, 2] : vector<1x32x1xi32> to vector<1xi32>
      %21 = vector.shape_cast %20 : vector<1xi32> to vector<1x1x1xi32>
      %22 = vector.extract %21[0, 0, 0] : i32 from vector<1x1x1xi32>
      %23 = vector.broadcast %22 : i32 to vector<1x8x128xi32>
      %c0_8 = arith.constant 0 : index
      %c0_9 = arith.constant 0 : index
      %c0_10 = arith.constant 0 : index
      %24 = vector.load %arg3[%c0_8, %c0_9, %c0_10] : memref<1x8x128xi32, #tpu.memory_space<vmem>>, vector<1x8x128xi32>
      tpu.vector_store %arg3[%c0_8, %c0_9, %c0_10], %23 {strides = array<i32>} : memref<1x8x128xi32, #tpu.memory_space<vmem>>, vector<1x8x128xi32>,
    } else {
    }
    %c0_i32_5 = arith.constant 0 : i32
    %15 = arith.cmpi eq, %arg0, %c0_i32_5 : i32
    %16 = arith.extui %15 : i1 to i32
    %c0_i32_6 = arith.constant 0 : i32
    %17 = arith.cmpi ne, %16, %c0_i32_6 : i32
    scf.if %17 {
      %18 = tpu.iota {dimensions = array<i32: 0>} : vector<32x1xi32>
      %c8_i32 = arith.constant 8 : i32
      %19 = vector.broadcast %c8_i32 : i32 to vector<32x1xi32>
      %20 = arith.cmpi slt, %18, %19 : vector<32x1xi32>
      %21 = arith.andi %20, %11 : vector<32x1xi1>
      %22 = arith.extui %21 : vector<32x1xi1> to vector<32x1xi32>
      %23 = vector.shape_cast %22 : vector<32x1xi32> to vector<1x32x1xi32>
      %cst_7 = arith.constant dense<0> : vector<1xi32>
      %24 = vector.multi_reduction <add>, %23, %cst_7 [1, 2] : vector<1x32x1xi32> to vector<1xi32>
      %25 = vector.shape_cast %24 : vector<1xi32> to vector<1x1x1xi32>
      %26 = vector.extract %25[0, 0, 0] : i32 from vector<1x1x1xi32>
      %27 = vector.broadcast %26 : i32 to vector<1x8x128xi32>
      %c0_8 = arith.constant 0 : index
      %c0_9 = arith.constant 0 : index
      %c0_10 = arith.constant 0 : index
      %28 = vector.load %arg3[%c0_8, %c0_9, %c0_10] : memref<1x8x128xi32, #tpu.memory_space<vmem>>, vector<1x8x128xi32>
      tpu.vector_store %arg3[%c0_8, %c0_9, %c0_10], %27 {strides = array<i32>} : memref<1x8x128xi32, #tpu.memory_space<vmem>>, vector<1x8x128xi32>,
    } else {
    }
    return
  }
  func.func @transform_0(%arg0: i32) -> (i32, i32) {
    %c0_i32 = arith.constant 0 : i32
    %c0_i32_0 = arith.constant 0 : i32
    return %arg0, %c0_i32 : i32, i32
  }
  func.func @transform_1(%arg0: i32) -> (i32, i32) {
    %c0_i32 = arith.constant 0 : i32
    %c0_i32_0 = arith.constant 0 : i32
    return %arg0, %c0_i32 : i32, i32
  }
  func.func @transform_2(%arg0: i32) -> (i32, i32, i32) {
    %c0_i32 = arith.constant 0 : i32
    %c0_i32_0 = arith.constant 0 : i32
    %c0_i32_1 = arith.constant 0 : i32
    return %arg0, %c0_i32, %c0_i32_0 : i32, i32, i32
  }
}

</mosaic_0001>

<llo_original>
// kernel: tpu_custom_call.1
$region0: #{tpu_custom_call.1}
  #allocation0 [shape = 'u32[]', space=smem, size = 0x4, offset = 0x4, fixed_abs, tag = 'smem constant byte address 0x4 - core index']
  #allocation1 [shape = 'u32[72,128]{1,0:T(1,128)}', space=vmem, size = 0x9000, scoped, tag = 'internal scratch']
  %s0 = inlined_call_operand.vmem [shape: f32[8,32], index: 0, kind: input, shape index: {}]
  %s1 = inlined_call_operand.vmem [shape: s32[8,1], index: 1, kind: input, shape index: {}]
  %s2 = inlined_call_operand.hbm [shape: s32[1,8,128], index: 2, kind: output, shape index: {}]
  %s3 = sld [smem:[#allocation0]]
  $region26: #{tpu_custom_call.1} parent=0
    _
  %s5 = ssub.s32 1, %s3
  %s6 = scalar_select 0, %s5, %s3
  $region1: #{tpu_custom_call.1} parent=0
    #allocation2 [shape = 'u8[4096]{0}', space=vmem, size = 0x1000, scoped, tag = 'output window, operand 0, single buffered']
    #allocation3 [shape = 's32[1]{0}', space=sflag, size = 0x4, scoped, tag = 'scoped memory for tpu_custom_call.1']
    %7 = vsyncpa [#allocation3], 0
    // Predicated region
    $region2: #{tpu_custom_call.1} parent=1 // pred_check
      _
    $region3: #{tpu_custom_call.1} parent=1 // pred_check_branch
      %9 = sbr.rel (0) target = $region5
    $region4: #{tpu_custom_call.1} parent=1 // pred_region
      _
    $region5: #{tpu_custom_call.1} parent=1 // pred_fallthru
      _
    // Predicated region
    $region6: #{tpu_custom_call.1} parent=1 // pred_check
      _
    $region7: #{tpu_custom_call.1} parent=1 // pred_check_branch
      %11 = sbr.rel (0) target = $region9
    $region8: #{tpu_custom_call.1} parent=1 // pred_region
      _
    $region9: #{tpu_custom_call.1} parent=1 // pred_fallthru
      _
    %v12 = vld [vmem:[%s0] sm:$0xff]
    %v13 = vld [vmem:[%s0 + $0x8] sm:$0xff]
    %v14 = vld [vmem:[%s0 + $0x10] sm:$0xff]
    %v15 = vld [vmem:[%s0 + $0x18] sm:$0xff]
    %v16 = vld [vmem:[%s1] sm:$0xff]
    %v17 = vld [vmem:[%s1 + $0x8] sm:$0xff]
    %v18 = vld [vmem:[%s1 + $0x10] sm:$0xff]
    %v19 = vld [vmem:[%s1 + $0x18] sm:$0xff]
    %v20 = vlaneseq
    %v21 = vand.u32 %v20, 127
    %vm22 = vcmask 261120
    %v23 = vsel %vm22, %v12, -inf
    %24 = vmax.xlane.f32.xlu0 %v23
    %v25 = vpop.xlane.xlu0 %24
    %v26 = vsel %vm22, %v13, -inf
    %27 = vmax.xlane.f32.xlu0 %v26
    %v28 = vpop.xlane.xlu0 %27
    %v29 = vsel %vm22, %v14, -inf
    %30 = vmax.xlane.f32.xlu0 %v29
    %v31 = vpop.xlane.xlu0 %30
    %v32 = vsel %vm22, %v15, -inf
    %33 = vmax.xlane.f32.xlu0 %v32
    %v34 = vpop.xlane.xlu0 %33
    %vm35 = vcmp.eq.f32.partialorder %v12, %v25
    %vm36 = vcmp.eq.f32.partialorder %v13, %v28
    %vm37 = vcmp.eq.f32.partialorder %v14, %v31
    %vm38 = vcmp.eq.f32.partialorder %v15, %v34
    %v39 = vsel %vm35, %v21, 32
    %v40 = vsel %vm36, %v21, 32
    %v41 = vsel %vm37, %v21, 32
    %v42 = vsel %vm38, %v21, 32
    %v43 = vsel %vm22, %v39, 2147483647
    %v44 = vand.u32 %v43, 65535
    %v45 = vshra.s32 %v43, 16
    %v46 = vcvt.s32.f32 %v44
    %v47 = vcvt.s32.f32 %v45
    %48 = vmin.xlane.f32.xlu0 %v47
    %v49 = vpop.xlane.xlu0 %48
    %vm50 = vcmp.eq.f32.partialorder %v47, %v49
    %v51 = vsel %vm50, %v46, inf
    %52 = vmin.xlane.f32.xlu0 %v51
    %v53 = vpop.xlane.xlu0 %52
    %v54 = vcvt.f32.s32 %v53
    %v55 = vcvt.f32.s32 %v49
    %v56 = vshll.u32 %v55, 16
    %v57 = vadd.s32 %v56, %v54
    %v58 = vsel %vm22, %v40, 2147483647
    %v59 = vand.u32 %v58, 65535
    %v60 = vshra.s32 %v58, 16
    %v61 = vcvt.s32.f32 %v59
    %v62 = vcvt.s32.f32 %v60
    %63 = vmin.xlane.f32.xlu0 %v62
    %v64 = vpop.xlane.xlu0 %63
    %vm65 = vcmp.eq.f32.partialorder %v62, %v64
    %v66 = vsel %vm65, %v61, inf
    %67 = vmin.xlane.f32.xlu0 %v66
    %v68 = vpop.xlane.xlu0 %67
    %v69 = vcvt.f32.s32 %v68
    %v70 = vcvt.f32.s32 %v64
    %v71 = vshll.u32 %v70, 16
    %v72 = vadd.s32 %v71, %v69
    %v73 = vsel %vm22, %v41, 2147483647
    %v74 = vand.u32 %v73, 65535
    %v75 = vshra.s32 %v73, 16
    %v76 = vcvt.s32.f32 %v74
    %v77 = vcvt.s32.f32 %v75
    %78 = vmin.xlane.f32.xlu0 %v77
    %v79 = vpop.xlane.xlu0 %78
    %vm80 = vcmp.eq.f32.partialorder %v77, %v79
    %v81 = vsel %vm80, %v76, inf
    %82 = vmin.xlane.f32.xlu0 %v81
    %v83 = vpop.xlane.xlu0 %82
    %v84 = vcvt.f32.s32 %v83
    %v85 = vcvt.f32.s32 %v79
    %v86 = vshll.u32 %v85, 16
    %v87 = vadd.s32 %v86, %v84
    %v88 = vsel %vm22, %v42, 2147483647
    %v89 = vand.u32 %v88, 65535
    %v90 = vshra.s32 %v88, 16
    %v91 = vcvt.s32.f32 %v89
    %v92 = vcvt.s32.f32 %v90
    %93 = vmin.xlane.f32.xlu0 %v92
    %v94 = vpop.xlane.xlu0 %93
    %vm95 = vcmp.eq.f32.partialorder %v92, %v94
    %v96 = vsel %vm95, %v91, inf
    %97 = vmin.xlane.f32.xlu0 %v96
    %v98 = vpop.xlane.xlu0 %97
    %v99 = vcvt.f32.s32 %v98
    %v100 = vcvt.f32.s32 %v94
    %v101 = vshll.u32 %v100, 16
    %v102 = vadd.s32 %v101, %v99
    %vm103 = vcmp.eq.s32.totalorder %v57, %v16
    %vm104 = vcmp.eq.s32.totalorder %v72, %v17
    %vm105 = vcmp.eq.s32.totalorder %v87, %v18
    %vm106 = vcmp.eq.s32.totalorder %v102, %v19
    %p107 = scmp.ne.s32.totalorder 0, 0
    // Predicated region
    $region10: #{tpu_custom_call.1} parent=1 // pred_check
      %p108 = pneg %p107
    $region11: #{tpu_custom_call.1} parent=1 // pred_check_branch
      %110 = sbr.rel (%p108) target = $region13
    $region12: #{tpu_custom_call.1} parent=1 // pred_region
      %v111 = vsel %vm103, 1, 0
      %v112 = vsel %vm104, 1, 0
      %v113 = vsel %vm105, 1, 0
      %v114 = vsel %vm106, 1, 0
      %vm115 = vcmask 7168
      %v116 = vsel %vm115, %v111, 0
      %v117 = vsel %vm115, %v112, 0
      %v118 = vsel %vm115, %v113, 0
      %v119 = vsel %vm115, %v114, 0
      %v120 = vadd.s32 %v116, %v117
      %v121 = vadd.s32 %v118, %v119
      %v122 = vadd.s32 %v120, %v121
      %v123 = vand.u32 %v122, 65535
      %v124 = vshrl.u32 %v122, 16
      %v125 = vcvt.s32.f32 %v123
      %v126 = vcvt.s32.f32 %v124
      %127 = vadd.xlane.f32.xlu0 %v125
      %v128 = vpop.xlane.xlu0 %127
      %129 = vadd.xlane.f32.xlu0 %v126
      %v130 = vpop.xlane.xlu0 %129
      %v131 = vcvt.f32.s32 %v128
      %v132 = vcvt.f32.s32 %v130
      %v133 = vshll.u32 %v132, 16
      %v134 = vadd.s32 %v133, %v131
      %v135 = vrot.slane %v134, 4
      %v136 = vadd.s32 %v134, %v135
      %v137 = vrot.slane %v136, 2
      %v138 = vadd.s32 %v136, %v137
      %v139 = vrot.slane %v138, 1
      %v140 = vadd.s32 %v138, %v139
      %s141 = vtos %v140
      %v142 = vstv %s141
      %143 = vst [vmem:[#allocation2] sm:$0xff] %v142
    $region13: #{tpu_custom_call.1} parent=1 // pred_fallthru
      _
    %p144 = scmp.eq.s32.totalorder 0, 0
    // Predicated region
    $region14: #{tpu_custom_call.1} parent=1 // pred_check
      %p145 = pneg %p144
    $region15: #{tpu_custom_call.1} parent=1 // pred_check_branch
      %147 = sbr.rel (%p145) target = $region17
    $region16: #{tpu_custom_call.1} parent=1 // pred_region
      %v148 = vlaneseq
      %v149 = vshrl.u32 %v148, 7
      %v150 = vadd.s32 %v149, 8
      %v151 = vadd.s32 %v149, 16
      %v152 = vadd.s32 %v149, 24
      %vm153 = vcmp.lt.s32.totalorder %v149, 8
      %vm154 = vcmp.lt.s32.totalorder %v150, 8
      %vm155 = vcmp.lt.s32.totalorder %v151, 8
      %vm156 = vcmp.lt.s32.totalorder %v152, 8
      %vm157 = vmand %vm153, %vm103
      %vm158 = vmand %vm154, %vm104
      %vm159 = vmand %vm155, %vm105
      %vm160 = vmand %vm156, %vm106
      %v161 = vsel %vm157, 1, 0
      %v162 = vsel %vm158, 1, 0
      %v163 = vsel %vm159, 1, 0
      %v164 = vsel %vm160, 1, 0
      %vm165 = vcmask 7168
      %v166 = vsel %vm165, %v161, 0
      %v167 = vsel %vm165, %v162, 0
      %v168 = vsel %vm165, %v163, 0
      %v169 = vsel %vm165, %v164, 0
      %v170 = vadd.s32 %v166, %v167
      %v171 = vadd.s32 %v168, %v169
      %v172 = vadd.s32 %v170, %v171
      %v173 = vand.u32 %v172, 65535
      %v174 = vshrl.u32 %v172, 16
      %v175 = vcvt.s32.f32 %v173
      %v176 = vcvt.s32.f32 %v174
      %177 = vadd.xlane.f32.xlu0 %v175
      %v178 = vpop.xlane.xlu0 %177
      %179 = vadd.xlane.f32.xlu0 %v176
      %v180 = vpop.xlane.xlu0 %179
      %v181 = vcvt.f32.s32 %v178
      %v182 = vcvt.f32.s32 %v180
      %v183 = vshll.u32 %v182, 16
      %v184 = vadd.s32 %v183, %v181
      %v185 = vrot.slane %v184, 4
      %v186 = vadd.s32 %v184, %v185
      %v187 = vrot.slane %v186, 2
      %v188 = vadd.s32 %v186, %v187
      %v189 = vrot.slane %v188, 1
      %v190 = vadd.s32 %v188, %v189
      %s191 = vtos %v190
      %v192 = vstv %s191
      %193 = vst [vmem:[#allocation2] sm:$0xff] %v192
    $region17: #{tpu_custom_call.1} parent=1 // pred_fallthru
      _
    // Predicated region
    $region18: #{tpu_custom_call.1} parent=1 // pred_check
      _
    $region19: #{tpu_custom_call.1} parent=1 // pred_check_branch
      %195 = sbr.rel (0) target = $region21
    $region20: #{tpu_custom_call.1} parent=1 // pred_region
      %197 = vsyncadd [#allocation3], 0
      %s199 = sshll.u32 [#allocation2], 4
      %s200 = int_to_ptr.vmem [resolvable:$true] %s199
      %s201 = sshll.u32 %s2, 4
      %s202 = int_to_ptr.hbm [resolvable:$true] %s201
      %204 = dma.vmem_to_hbm [thread:$0]  %s200, 128, %s202, [#allocation3]
    $region21: #{tpu_custom_call.1} parent=1 // pred_fallthru
      _
    // Predicated region
    $region22: #{tpu_custom_call.1} parent=1 // pred_check
      _
    $region23: #{tpu_custom_call.1} parent=1 // pred_check_branch
      %206 = sbr.rel (0) target = $region25
    $region24: #{tpu_custom_call.1} parent=1 // pred_region
      %208 = dma.done [#allocation3], 128
    $region25: #{tpu_custom_call.1} parent=1 // pred_fallthru
      _
    %209 = vsyncpa [#allocation3], 1

</llo_original>
